<compile_context>
chip_gen: v7x
topology: tpu7x:2x2x1
jax: 0.10.0
libtpu: 0.0.40
codegen_flags: <defaults>
</compile_context>

<pallas_src>
import functools

import jax
import jax.numpy as jnp
from jax.experimental import pallas as pl
from jax.experimental.pallas import tpu as pltpu


def _pick_spatial_tile(S, cap=2048):
    """Largest multiple of 128 that divides S (capped); else the full extent."""
    if S % 128 != 0:
        return S
    best = 128
    t = 128
    while t <= min(S, cap):
        if S % t == 0:
            best = t
        t += 128
    return best


def _decode_kernel(anch_ref, gxy_ref, x_ref, o_ref, *, stride):
    """Decode one (batch, spatial-tile) block.

    anch_ref : VMEM (1, nA, 2, 1)       anchors * stride (f32)
    gxy_ref  : VMEM (1, 1, 2, s_tile)   flattened grid_x (row 0) / grid_y (row 1)
    x_ref    : VMEM (1, nA, no, s_tile) raw predictions, spatial flattened on lanes
    o_ref    : VMEM (1, nA, no, s_tile) decoded predictions (f32)
    """

    def _sigmoid(v):
        # exp and the reciprocal both go to the EUP slot (VALU stays free).
        return pl.reciprocal(1.0 + jnp.exp(-v), approx=True)

    gxy = gxy_ref[...]     # (1, 1, 2, s_tile) -> broadcasts over anchors
    anch = anch_ref[...]   # (1, nA, 2, 1)     -> broadcasts over lanes

    # Cast to f32 on the VMEM tile (input may be bf16/f16 from the conv).
    xy_raw = x_ref[:, :, 0:2, :].astype(jnp.float32)
    wh_raw = x_ref[:, :, 2:4, :].astype(jnp.float32)
    cp_raw = x_ref[:, :, 4:, :].astype(jnp.float32)

    # xy channels 0:2, all anchors at once: (sigmoid + grid) * stride
    o_ref[:, :, 0:2, :] = ((_sigmoid(xy_raw) + gxy) * stride).astype(o_ref.dtype)

    # wh channels 2:4, all anchors at once: exp * (anchor * stride)
    o_ref[:, :, 2:4, :] = (jnp.exp(wh_raw) * anch).astype(o_ref.dtype)

    # conf + class probs (channels 4:), all anchors at once: sigmoid
    o_ref[:, :, 4:, :] = _sigmoid(cp_raw).astype(o_ref.dtype)


def yolo_layer_forward(p, anchors, num_classes, stride, training=True):
    """Mirrors YOLOLayer.forward: returns (p_permuted, p_decoded)."""
    bs, C, nG, nG2 = p.shape
    assert nG == nG2
    nA = anchors.shape[0]
    no = num_classes + 5
    assert C == nA * no
    S = nG * nG

    p5 = p.reshape(bs, nA, no, nG, nG)
    # First return value: view + permute(0, 3, 4, 1, 2) -> (bs, nG, nG, nA, no)
    p_perm = jnp.transpose(p5, (0, 3, 4, 1, 2))

    # Lane-dense kernel input: flattened spatial dim last (maps onto lanes).
    # Keep the input dtype: the f32 cast happens inside the kernel.
    x_flat = p5.reshape(bs, nA, no, S)

    # Hoisted invariants: stride folded into anchors; flattened grid coords.
    anch_s = (anchors.astype(jnp.float32) * float(stride)).reshape(1, nA, 2, 1)
    ar = jnp.arange(nG, dtype=jnp.float32)
    gx = jnp.broadcast_to(ar[None, :], (nG, nG)).reshape(S)  # column index j
    gy = jnp.broadcast_to(ar[:, None], (nG, nG)).reshape(S)  # row index i
    gxy = jnp.stack([gx, gy], axis=0).reshape(1, 1, 2, S)

    s_tile = _pick_spatial_tile(S)
    n_s = S // s_tile

    n_elems = bs * nA * no * S
    in_bytes = n_elems * jnp.dtype(x_flat.dtype).itemsize
    out_bytes = n_elems * 4
    cost = pl.CostEstimate(
        flops=6 * n_elems,
        transcendentals=2 * n_elems,
        bytes_accessed=int(in_bytes + out_bytes + 4 * (gxy.size + anch_s.size)),
    )

    decoded = pl.pallas_call(
        functools.partial(_decode_kernel, stride=float(stride)),
        out_shape=jax.ShapeDtypeStruct((bs, nA, no, S), jnp.float32),
        grid=(bs, n_s),
        in_specs=[
            pl.BlockSpec((1, nA, 2, 1), lambda b, s: (0, 0, 0, 0)),
            pl.BlockSpec((1, 1, 2, s_tile), lambda b, s: (0, 0, 0, s)),
            pl.BlockSpec((1, nA, no, s_tile), lambda b, s: (b, 0, 0, s)),
        ],
        out_specs=pl.BlockSpec((1, nA, no, s_tile), lambda b, s: (b, 0, 0, s)),
        compiler_params=pltpu.CompilerParams(
            dimension_semantics=("parallel", "parallel"),
            vmem_limit_bytes=32 * 1024 * 1024,
        ),
        cost_estimate=cost,
    )(anch_s, gxy, x_flat)

    # Layout glue back to the module's return contract (bs, nG, nG, nA, no).
    p_de = jnp.transpose(decoded.reshape(bs, nA, no, nG, nG), (0, 3, 4, 1, 2))
    if not training:
        # eval mode: pred_bbox.view(-1, 5 + num_classes)
        p_de = p_de.reshape(-1, no)
    return p_perm, p_de


def _reference_decode(p, anchors, num_classes, stride):
    """Pure-JAX reference matching the PyTorch __decode (training mode)."""
    bs, C, nG, _ = p.shape
    nA = anchors.shape[0]
    no = num_classes + 5
    pp = jnp.transpose(p.reshape(bs, nA, no, nG, nG), (0, 3, 4, 1, 2)).astype(
        jnp.float32
    )
    x_idx = jnp.broadcast_to(jnp.arange(nG)[None, :], (nG, nG))
    y_idx = jnp.broadcast_to(jnp.arange(nG)[:, None], (nG, nG))
    grid_xy = jnp.stack([x_idx, y_idx], axis=-1).astype(jnp.float32)  # (nG, nG, 2)
    grid_xy = grid_xy[None, :, :, None, :]  # (1, nG, nG, 1, 2)

    raw_dxdy = pp[..., 0:2]
    raw_dwdh = pp[..., 2:4]
    raw_conf = pp[..., 4:5]
    raw_prob = pp[..., 5:]

    pred_xy = (jax.nn.sigmoid(raw_dxdy) + grid_xy) * stride
    pred_wh = jnp.exp(raw_dwdh) * anchors[None, None, None, :, :] * stride
    pred_conf = jax.nn.sigmoid(raw_conf)
    pred_prob = jax.nn.sigmoid(raw_prob)
    return jnp.concatenate([pred_xy, pred_wh, pred_conf, pred_prob], axis=-1)


if __name__ == "__main__":
    # Small, deterministic config (the PyTorch decode hardcodes 3 anchors in its
    # grid repeat, so we use 3 anchors).
    bs, num_classes, nG, stride = 2, 4, 16, 8
    nA = 3
    no = num_classes + 5

    anchors = jnp.array(
        [[1.25, 1.625], [2.0, 3.75], [4.125, 2.875]], dtype=jnp.float32
    )

    key = jax.random.PRNGKey(0)
    x = jax.random.normal(key, (bs, nA * no, nG, nG), dtype=jnp.float32)

    p_perm, p_de = yolo_layer_forward(x, anchors, num_classes, stride, training=True)
    p_perm = jax.block_until_ready(p_perm)
    p_de = jax.block_until_ready(p_de)

    # Correctness check against a pure-JAX reference of the PyTorch semantics.
    # Tolerance accounts for the approximate EUP reciprocal used for sigmoid.
    ref = _reference_decode(x, anchors, num_classes, stride)
    assert p_perm.shape == (bs, nG, nG, nA, no)
    assert p_de.shape == (bs, nG, nG, nA, no)
    assert jnp.array_equal(
        p_perm, jnp.transpose(x.reshape(bs, nA, no, nG, nG), (0, 3, 4, 1, 2))
    )
    assert jnp.allclose(p_de, ref, atol=2e-2, rtol=2e-3)

    print("KERNEL_OK")
</pallas_src>

<mosaic_0001>
module attributes {stable_mosaic.version = 11 : i64} {
  func.func @_decode_kernel(%arg0: i32, %arg1: i32, %arg2: memref<1x3x2x1xf32, #tpu.memory_space<vmem>>, %arg3: memref<1x1x2x256xf32, #tpu.memory_space<vmem>>, %arg4: memref<1x3x9x256xf32, #tpu.memory_space<vmem>>, %arg5: memref<1x3x9x256xf32, #tpu.memory_space<vmem>>) attributes {dimension_semantics = [#tpu.dimension_semantics<parallel>, #tpu.dimension_semantics<parallel>], iteration_bounds = array<i64: 2, 1>, scalar_prefetch = 0 : i64, scratch_operands = 0 : i64, tpu.core_type = #tpu.core_type<tc>, window_params = [{pipeline_mode = #tpu.pipeline_mode<synchronous>, transform_indices = @transform_0, window_bounds = array<i64: 1, 3, 2, 1>}, {transform_indices = @transform_1, window_bounds = array<i64: 1, 1, 2, 256>}, {transform_indices = @transform_2, window_bounds = array<i64: 1, 3, 9, 256>}, {transform_indices = @transform_3, window_bounds = array<i64: 1, 3, 9, 256>}]} {
    %c0 = arith.constant 0 : index
    %c0_0 = arith.constant 0 : index
    %c0_1 = arith.constant 0 : index
    %c0_2 = arith.constant 0 : index
    %0 = vector.load %arg3[%c0, %c0_0, %c0_1, %c0_2] : memref<1x1x2x256xf32, #tpu.memory_space<vmem>>, vector<1x1x2x256xf32>
    %c0_3 = arith.constant 0 : index
    %c0_4 = arith.constant 0 : index
    %c0_5 = arith.constant 0 : index
    %c0_6 = arith.constant 0 : index
    %1 = vector.load %arg2[%c0_3, %c0_4, %c0_5, %c0_6] : memref<1x3x2x1xf32, #tpu.memory_space<vmem>>, vector<1x3x2x1xf32>
    %c0_7 = arith.constant 0 : index
    %c0_8 = arith.constant 0 : index
    %c0_9 = arith.constant 0 : index
    %c0_10 = arith.constant 0 : index
    %2 = vector.load %arg4[%c0_7, %c0_8, %c0_9, %c0_10] : memref<1x3x9x256xf32, #tpu.memory_space<vmem>>, vector<1x3x2x256xf32>
    %c0_11 = arith.constant 0 : index
    %c0_12 = arith.constant 0 : index
    %c2 = arith.constant 2 : index
    %c0_13 = arith.constant 0 : index
    %3 = vector.load %arg4[%c0_11, %c0_12, %c2, %c0_13] : memref<1x3x9x256xf32, #tpu.memory_space<vmem>>, vector<1x3x2x256xf32>
    %c0_14 = arith.constant 0 : index
    %c0_15 = arith.constant 0 : index
    %c4 = arith.constant 4 : index
    %c0_16 = arith.constant 0 : index
    %4 = vector.load %arg4[%c0_14, %c0_15, %c4, %c0_16] : memref<1x3x9x256xf32, #tpu.memory_space<vmem>>, vector<1x3x5x256xf32>
    %cst = arith.constant 0.000000e+00 : f32
    %5 = vector.broadcast %cst : f32 to vector<1x3x2x256xf32>
    %6 = arith.subf %5, %2 : vector<1x3x2x256xf32>
    %7 = math.exp %6 : vector<1x3x2x256xf32>
    %cst_17 = arith.constant 1.000000e+00 : f32
    %8 = vector.broadcast %cst_17 : f32 to vector<1x3x2x256xf32>
    %9 = arith.addf %8, %7 : vector<1x3x2x256xf32>
    %10 = tpu.reciprocal %9 {approx = true} : vector<1x3x2x256xf32> -> vector<1x3x2x256xf32>
    %11 = vector.broadcast %0 : vector<1x1x2x256xf32> to vector<1x3x2x256xf32>
    %12 = arith.addf %10, %11 : vector<1x3x2x256xf32>
    %cst_18 = arith.constant 8.000000e+00 : f32
    %13 = vector.broadcast %cst_18 : f32 to vector<1x3x2x256xf32>
    %14 = arith.mulf %12, %13 : vector<1x3x2x256xf32>
    %c0_19 = arith.constant 0 : index
    %c0_20 = arith.constant 0 : index
    %c0_21 = arith.constant 0 : index
    %c0_22 = arith.constant 0 : index
    %15 = vector.load %arg5[%c0_19, %c0_20, %c0_21, %c0_22] : memref<1x3x9x256xf32, #tpu.memory_space<vmem>>, vector<1x3x2x256xf32>
    tpu.vector_store %arg5[%c0_19, %c0_20, %c0_21, %c0_22], %14 {strides = array<i32>} : memref<1x3x9x256xf32, #tpu.memory_space<vmem>>, vector<1x3x2x256xf32>,
    %16 = math.exp %3 : vector<1x3x2x256xf32>
    %17 = vector.broadcast %1 : vector<1x3x2x1xf32> to vector<1x3x2x256xf32>
    %18 = arith.mulf %16, %17 : vector<1x3x2x256xf32>
    %c0_23 = arith.constant 0 : index
    %c0_24 = arith.constant 0 : index
    %c2_25 = arith.constant 2 : index
    %c0_26 = arith.constant 0 : index
    %19 = vector.load %arg5[%c0_23, %c0_24, %c2_25, %c0_26] : memref<1x3x9x256xf32, #tpu.memory_space<vmem>>, vector<1x3x2x256xf32>
    tpu.vector_store %arg5[%c0_23, %c0_24, %c2_25, %c0_26], %18 {strides = array<i32>} : memref<1x3x9x256xf32, #tpu.memory_space<vmem>>, vector<1x3x2x256xf32>,
    %cst_27 = arith.constant 0.000000e+00 : f32
    %20 = vector.broadcast %cst_27 : f32 to vector<1x3x5x256xf32>
    %21 = arith.subf %20, %4 : vector<1x3x5x256xf32>
    %22 = math.exp %21 : vector<1x3x5x256xf32>
    %cst_28 = arith.constant 1.000000e+00 : f32
    %23 = vector.broadcast %cst_28 : f32 to vector<1x3x5x256xf32>
    %24 = arith.addf %23, %22 : vector<1x3x5x256xf32>
    %25 = tpu.reciprocal %24 {approx = true} : vector<1x3x5x256xf32> -> vector<1x3x5x256xf32>
    %c0_29 = arith.constant 0 : index
    %c0_30 = arith.constant 0 : index
    %c4_31 = arith.constant 4 : index
    %c0_32 = arith.constant 0 : index
    %26 = vector.load %arg5[%c0_29, %c0_30, %c4_31, %c0_32] : memref<1x3x9x256xf32, #tpu.memory_space<vmem>>, vector<1x3x5x256xf32>
    tpu.vector_store %arg5[%c0_29, %c0_30, %c4_31, %c0_32], %25 {strides = array<i32>} : memref<1x3x9x256xf32, #tpu.memory_space<vmem>>, vector<1x3x5x256xf32>,
    return
  }
  func.func @transform_0(%arg0: i32, %arg1: i32) -> (i32, i32, i32, i32) {
    %c0_i32 = arith.constant 0 : i32
    %c0_i32_0 = arith.constant 0 : i32
    %c0_i32_1 = arith.constant 0 : i32
    %c0_i32_2 = arith.constant 0 : i32
    %c0_i32_3 = arith.constant 0 : i32
    return %c0_i32, %c0_i32_0, %c0_i32_1, %c0_i32_2 : i32, i32, i32, i32
  }
  func.func @transform_1(%arg0: i32, %arg1: i32) -> (i32, i32, i32, i32) {
    %c0_i32 = arith.constant 0 : i32
    %c0_i32_0 = arith.constant 0 : i32
    %c0_i32_1 = arith.constant 0 : i32
    %c0_i32_2 = arith.constant 0 : i32
    return %c0_i32, %c0_i32_0, %c0_i32_1, %arg1 : i32, i32, i32, i32
  }
  func.func @transform_2(%arg0: i32, %arg1: i32) -> (i32, i32, i32, i32) {
    %c0_i32 = arith.constant 0 : i32
    %c0_i32_0 = arith.constant 0 : i32
    %c0_i32_1 = arith.constant 0 : i32
    return %arg0, %c0_i32, %c0_i32_0, %arg1 : i32, i32, i32, i32
  }
  func.func @transform_3(%arg0: i32, %arg1: i32) -> (i32, i32, i32, i32) {
    %c0_i32 = arith.constant 0 : i32
    %c0_i32_0 = arith.constant 0 : i32
    %c0_i32_1 = arith.constant 0 : i32
    return %arg0, %c0_i32, %c0_i32_0, %arg1 : i32, i32, i32, i32
  }
}

</mosaic_0001>

<llo_original>
// kernel: tpu_custom_call.1
$region0: #{tpu_custom_call.1}
  #allocation0 [shape = 'u32[]', space=smem, size = 0x4, offset = 0x4, fixed_abs, tag = 'smem constant byte address 0x4 - core index']
  #allocation1 [shape = 'u32[144,128]{1,0:T(1,128)}', space=vmem, size = 0x12000, scoped, tag = 'internal scratch']
  %s0 = inlined_call_operand.vmem [shape: f32[1,3,2,1], index: 0, kind: input, shape index: {}]
  %s1 = inlined_call_operand.vmem [shape: f32[1,1,2,256], index: 1, kind: input, shape index: {}]
  %s2 = inlined_call_operand.vmem [shape: f32[2,3,9,256], index: 2, kind: input, shape index: {}]
  %s3 = inlined_call_operand.vmem [shape: f32[2,3,9,256], index: 3, kind: output, shape index: {}]
  %s4 = sld [smem:[#allocation0]]
  $region45: #{tpu_custom_call.1} parent=0
    _
  %s6 = ssub.s32 1, %s4
  %s7 = scalar_select 0, %s6, %s4
  loop: start=0, step=1, limit=4
  $region2: #{tpu_custom_call.1} parent=0 // loop_pre_header
    _
  $region3: #{tpu_custom_call.1} parent=0 // loop_header
    %s9 = sphi 0, %s13
    %p10 = scmp.ge.s32.totalorder %s9, 4
    %s16 = sphi 0, %s28
    %s17 = sphi 0, %s24
    %s18 = sphi 0, %s16
    %s19 = sphi 0, %s17
    %s20 = sphi 0, %s18
    %s21 = sphi 0, %s19
    %s29 = sphi 0, %s29
    %s31 = sphi 0, %s29
    %s32 = sphi 0, %s31
    %s46 = sphi 0, %s32
    %s52 = sphi 0, %s54
    %s55 = sphi 0, %s52
    %s56 = sphi 0, %s55
    %s72 = sphi 0, %s56
    %s80 = sphi 0, %s82
    %s83 = sphi 0, %s80
    %s84 = sphi 0, %s83
    %s100 = sphi 0, %s84
    %s108 = sphi 0, %s110
    %s111 = sphi 0, %s108
    %s112 = sphi 0, %s111
    %s128 = sphi 0, %s112
  $region4: #{tpu_custom_call.1} parent=0 // loop_header_branch
    %12 = sbr.rel (%p10) target = $region8
  $region5: #{tpu_custom_call.1} parent=0 // loop_body
    %s14 = ssub.s32 %s9, 1
    %s15 = ssub.s32 %s9, 2
    %s22 = sadd.s32 1, %s17
    %p23 = scmp.ge.s32.totalorder %s22, 1
    %s24 = scalar_select %p23, 0, %s22
    %s25 = sadd.s32 1, %s16
    %s26 = scalar_select %p23, %s25, %s16
    %p27 = scmp.ge.s32.totalorder %s26, 2
    %s28 = scalar_select %p27, 0, %s26
    %s30 = sadd.s32 %s29, 1
    %p33 = scmp.eq.s32.totalorder %s9, 1
    %p34 = scmp.ne.s32.totalorder %s29, %s31
    %p35 = scmp.eq.s32.totalorder %s9, 0
    %p36 = por %p34, %p35
    %p37 = scmp.ne.s32.totalorder %s29, %s31
    %p38 = scmp.eq.s32.totalorder %s14, 1
    %p39 = por %p37, %p38
    %p40 = scmp.ne.s32.totalorder %s31, %s32
    %p41 = scmp.eq.s32.totalorder %s14, 0
    %p42 = por %p40, %p41
    %p43 = scmp.ne.s32.totalorder %s31, %s32
    %p44 = scmp.eq.s32.totalorder %s15, 1
    %p45 = por %p43, %p44
    %p47 = scmp.ne.s32.totalorder %s32, %s46
    %p48 = scmp.eq.s32.totalorder %s15, 0
    %p49 = por %p47, %p48
    %s50 = ssub.s32 %s17, %s24
    %p51 = scmp.eq.s32.totalorder %s50, 0
    %s53 = sadd.s32 %s52, 1
    %s54 = scalar_select %p51, %s52, %s53
    %p57 = pneg %p51
    %p58 = scmp.eq.s32.totalorder %s9, 1
    %p59 = por %p57, %p58
    %p60 = scmp.ne.s32.totalorder %s52, %s55
    %p61 = scmp.eq.s32.totalorder %s9, 0
    %p62 = por %p60, %p61
    %p63 = scmp.ne.s32.totalorder %s52, %s55
    %p64 = scmp.eq.s32.totalorder %s14, 1
    %p65 = por %p63, %p64
    %p66 = scmp.ne.s32.totalorder %s55, %s56
    %p67 = scmp.eq.s32.totalorder %s14, 0
    %p68 = por %p66, %p67
    %p69 = scmp.ne.s32.totalorder %s55, %s56
    %p70 = scmp.eq.s32.totalorder %s15, 1
    %p71 = por %p69, %p70
    %p73 = scmp.ne.s32.totalorder %s56, %s72
    %p74 = scmp.eq.s32.totalorder %s15, 0
    %p75 = por %p73, %p74
    %s76 = ssub.s32 %s16, %s28
    %s77 = ssub.s32 %s17, %s24
    %s78 = sor.u32 %s76, %s77
    %p79 = scmp.eq.s32.totalorder %s78, 0
    %s81 = sadd.s32 %s80, 1
    %s82 = scalar_select %p79, %s80, %s81
    %p85 = pneg %p79
    %p86 = scmp.eq.s32.totalorder %s9, 1
    %p87 = por %p85, %p86
    %p88 = scmp.ne.s32.totalorder %s80, %s83
    %p89 = scmp.eq.s32.totalorder %s9, 0
    %p90 = por %p88, %p89
    %p91 = scmp.ne.s32.totalorder %s80, %s83
    %p92 = scmp.eq.s32.totalorder %s14, 1
    %p93 = por %p91, %p92
    %p94 = scmp.ne.s32.totalorder %s83, %s84
    %p95 = scmp.eq.s32.totalorder %s14, 0
    %p96 = por %p94, %p95
    %p97 = scmp.ne.s32.totalorder %s83, %s84
    %p98 = scmp.eq.s32.totalorder %s15, 1
    %p99 = por %p97, %p98
    %p101 = scmp.ne.s32.totalorder %s84, %s100
    %p102 = scmp.eq.s32.totalorder %s15, 0
    %p103 = por %p101, %p102
    %s104 = ssub.s32 %s16, %s28
    %s105 = ssub.s32 %s17, %s24
    %s106 = sor.u32 %s104, %s105
    %p107 = scmp.eq.s32.totalorder %s106, 0
    %s109 = sadd.s32 %s108, 1
    %s110 = scalar_select %p107, %s108, %s109
    %p113 = pneg %p107
    %p114 = scmp.eq.s32.totalorder %s9, 1
    %p115 = por %p113, %p114
    %p116 = scmp.ne.s32.totalorder %s108, %s111
    %p117 = scmp.eq.s32.totalorder %s9, 0
    %p118 = por %p116, %p117
    %p119 = scmp.ne.s32.totalorder %s108, %s111
    %p120 = scmp.eq.s32.totalorder %s14, 1
    %p121 = por %p119, %p120
    %p122 = scmp.ne.s32.totalorder %s111, %s112
    %p123 = scmp.eq.s32.totalorder %s14, 0
    %p124 = por %p122, %p123
    %p125 = scmp.ne.s32.totalorder %s111, %s112
    %p126 = scmp.eq.s32.totalorder %s15, 1
    %p127 = por %p125, %p126
    %p129 = scmp.ne.s32.totalorder %s112, %s128
    %p130 = scmp.eq.s32.totalorder %s15, 0
    %p131 = por %p129, %p130
    %p132 = scmp.le.s32.totalorder 1, %s9
    %p133 = scmp.lt.s32.totalorder %s9, 3
    %p134 = pnand %p132, %p133
    %p135 = pneg %p134
    // Predicated region
    $region9: #{tpu_custom_call.1} parent=5 // pred_check
      _
    $region10: #{tpu_custom_call.1} parent=5 // pred_check_branch
      %137 = sbr.rel (%p134) target = $region12
    $region11: #{tpu_custom_call.1} parent=5 // pred_region
      %s138 = ssub.s32 %s9, 1
      // Predicated region
      $region13: #{tpu_custom_call.1} parent=11 // pred_check
        %p139 = pneg %p42
      $region14: #{tpu_custom_call.1} parent=11 // pred_check_branch
        %141 = sbr.rel (%p139) target = $region16
      $region15: #{tpu_custom_call.1} parent=11 // pred_region
        _
      $region16: #{tpu_custom_call.1} parent=11 // pred_fallthru
        _
      // Predicated region
      $region17: #{tpu_custom_call.1} parent=11 // pred_check
        %p142 = pneg %p68
      $region18: #{tpu_custom_call.1} parent=11 // pred_check_branch
        %144 = sbr.rel (%p142) target = $region20
      $region19: #{tpu_custom_call.1} parent=11 // pred_region
        %s145 = smul.u32 2, %s19
        %p146 = scmp.lt.s32.totalorder %s145, 1
        %s147 = scalar_select %p146, %s145, 1
        %s148 = smul.addr %s147, 2
        %s149 = scalar_lea.vmem %s1, %s148
        %s150 = smul.u32 2, %s19
      $region20: #{tpu_custom_call.1} parent=11 // pred_fallthru
        _
    $region12: #{tpu_custom_call.1} parent=5 // pred_fallthru
      _
    %p151 = scmp.lt.s32.totalorder %s9, 2
    // Predicated region
    $region21: #{tpu_custom_call.1} parent=5 // pred_check
      %p152 = pneg %p151
    $region22: #{tpu_custom_call.1} parent=5 // pred_check_branch
      %154 = sbr.rel (%p152) target = $region24
    $region23: #{tpu_custom_call.1} parent=5 // pred_region
      // Predicated region
      $region25: #{tpu_custom_call.1} parent=23 // pred_check
        %p155 = pneg %p90
      $region26: #{tpu_custom_call.1} parent=23 // pred_check_branch
        %157 = sbr.rel (%p155) target = $region28
      $region27: #{tpu_custom_call.1} parent=23 // pred_region
        %s158 = smul.u32 2, %s17
        %p159 = scmp.lt.s32.totalorder %s16, 1
        %s160 = scalar_select %p159, %s16, 1
        %p161 = scmp.lt.s32.totalorder %s158, 1
        %s162 = scalar_select %p161, %s158, 1
        %s163 = smul.addr %s160, 12
        %s164 = sadd.s32 %s162, %s163
        %s165 = smul.addr %s164, 8
        %s166 = scalar_lea.vmem %s2, %s165
        %s167 = smul.u32 2, %s17
      $region28: #{tpu_custom_call.1} parent=23 // pred_fallthru
        _
    $region24: #{tpu_custom_call.1} parent=5 // pred_fallthru
      _
    %p168 = scmp.le.s32.totalorder 1, %s9
    %p169 = scmp.lt.s32.totalorder %s9, 3
    %p170 = pnand %p168, %p169
    %p171 = pneg %p170
    // Predicated region
    $region29: #{tpu_custom_call.1} parent=5 // pred_check
      _
    $region30: #{tpu_custom_call.1} parent=5 // pred_check_branch
      %173 = sbr.rel (%p170) target = $region32
    $region31: #{tpu_custom_call.1} parent=5 // pred_region
      %s174 = ssub.s32 %s9, 1
      %p175 = pneg %p42
      %p176 = pneg %p39
      %s177 = smul.u32 2, %s19
      %p178 = scmp.lt.s32.totalorder %s177, 1
      %s179 = scalar_select %p178, %s177, 1
      %s180 = smul.addr %s179, 2
      %s181 = scalar_lea.vmem %s1, %s180
      %p182 = pneg %p68
      %p183 = pneg %p65
      %s184 = smul.u32 2, %s19
      %p185 = scmp.lt.s32.totalorder %s18, 1
      %s186 = scalar_select %p185, %s18, 1
      %p187 = scmp.lt.s32.totalorder %s184, 1
      %s188 = scalar_select %p187, %s184, 1
      %s189 = smul.addr %s186, 12
      %s190 = sadd.s32 %s188, %s189
      %s191 = smul.addr %s190, 8
      %s192 = scalar_lea.vmem %s2, %s191
      %p193 = pneg %p96
      %p194 = pneg %p93
      %p195 = pneg %p124
      %p196 = pneg %p121
      %s197 = smul.u32 2, %s19
      %p198 = scmp.lt.s32.totalorder %s18, 1
      %s199 = scalar_select %p198, %s18, 1
      %p200 = scmp.lt.s32.totalorder %s197, 1
      %s201 = scalar_select %p200, %s197, 1
      %s202 = smul.addr %s199, 12
      %s203 = sadd.s32 %s201, %s202
      %s204 = smul.addr %s203, 8
      %s205 = scalar_lea.vmem %s3, %s204
      %s206 = smul.u32 2, %s19
      %p207 = scmp.lt.s32.totalorder %s206, 1
      %s208 = scalar_select %p207, %s206, 1
      %s209 = smul.addr %s208, 2
      %s210 = scalar_lea.vmem %s1, %s209
      %s211 = smul.u32 2, %s19
      %s212 = smul.u32 2, %s19
      %p213 = scmp.lt.s32.totalorder %s18, 1
      %s214 = scalar_select %p213, %s18, 1
      %p215 = scmp.lt.s32.totalorder %s212, 1
      %s216 = scalar_select %p215, %s212, 1
      %s217 = smul.addr %s214, 12
      %s218 = sadd.s32 %s216, %s217
      %s219 = smul.addr %s218, 8
      %s220 = scalar_lea.vmem %s2, %s219
      %s221 = smul.u32 2, %s19
      %s222 = smul.u32 2, %s19
      %p223 = scmp.lt.s32.totalorder %s18, 1
      %s224 = scalar_select %p223, %s18, 1
      %p225 = scmp.lt.s32.totalorder %s222, 1
      %s226 = scalar_select %p225, %s222, 1
      %s227 = smul.addr %s224, 12
      %s228 = sadd.s32 %s226, %s227
      %s229 = smul.addr %s228, 8
      %s230 = scalar_lea.vmem %s3, %s229
      %s231 = smul.u32 2, %s19
      %v232 = vld [vmem:[%s210] sm:$0xf]
      %v233 = vld [vmem:[%s0] sm:$0x3]
      %v234 = vld [vmem:[%s0 + $0x2] sm:$0x3]
      %v235 = vld [vmem:[%s0 + $0x4] sm:$0x3]
      %v236 = vld [vmem:[%s220] sm:$0x3]
      %v237 = vld [vmem:[%s220 + $0x8] sm:$0x3]
      %v238 = vld [vmem:[%s220 + $0x20] sm:$0x3]
      %v239 = vld [vmem:[%s220 + $0x28] sm:$0x3]
      %v240 = vld [vmem:[%s220 + $0x40] sm:$0x3]
      %v241 = vld [vmem:[%s220 + $0x48] sm:$0x3]
      %v242 = vld [vmem:[%s220] sm:$0xc]
      %v243 = vld [vmem:[%s220 + $0x8] sm:$0xc]
      %v244 = vld [vmem:[%s220 + $0x20] sm:$0xc]
      %v245 = vld [vmem:[%s220 + $0x28] sm:$0xc]
      %v246 = vld [vmem:[%s220 + $0x40] sm:$0xc]
      %v247 = vld [vmem:[%s220 + $0x48] sm:$0xc]
      %v248 = vld [vmem:[%s220] sm:$0xf0]
      %v249 = vld [vmem:[%s220 + $0x8] sm:$0xf0]
      %v250 = vld [vmem:[%s220 + $0x10] sm:$0x1]
      %v251 = vld [vmem:[%s220 + $0x18] sm:$0x1]
      %v252 = vld [vmem:[%s220 + $0x20] sm:$0xf0]
      %v253 = vld [vmem:[%s220 + $0x28] sm:$0xf0]
      %v254 = vld [vmem:[%s220 + $0x30] sm:$0x1]
      %v255 = vld [vmem:[%s220 + $0x38] sm:$0x1]
      %v256 = vld [vmem:[%s220 + $0x40] sm:$0xf0]
      %v257 = vld [vmem:[%s220 + $0x48] sm:$0xf0]
      %v258 = vld [vmem:[%s220 + $0x50] sm:$0x1]
      %v259 = vld [vmem:[%s220 + $0x58] sm:$0x1]
      %v260 = vsub.f32 0.0, %v236
      %v261 = vsub.f32 0.0, %v237
      %v262 = vsub.f32 0.0, %v238
      %v263 = vsub.f32 0.0, %v239
      %v264 = vsub.f32 0.0, %v240
      %v265 = vsub.f32 0.0, %v241
      %v266 = vmul.f32 %v260, 1.442695
      %v267 = vpow.pop %v266
      %v268 = vmul.f32 %v261, 1.442695
      %v269 = vpow.pop %v268
      %v270 = vmul.f32 %v262, 1.442695
      %v271 = vpow.pop %v270
      %v272 = vmul.f32 %v263, 1.442695
      %v273 = vpow.pop %v272
      %v274 = vmul.f32 %v264, 1.442695
      %v275 = vpow.pop %v274
      %v276 = vmul.f32 %v265, 1.442695
      %v277 = vpow.pop %v276
      %v278 = vadd.f32 %v267, 1.0
      %v279 = vadd.f32 %v269, 1.0
      %v280 = vadd.f32 %v271, 1.0
      %v281 = vadd.f32 %v273, 1.0
      %v282 = vadd.f32 %v275, 1.0
      %v283 = vadd.f32 %v277, 1.0
      %v284 = vrcp.pop %v278
      %v285 = vrcp.pop %v279
      %v286 = vrcp.pop %v280
      %v287 = vrcp.pop %v281
      %v288 = vrcp.pop %v282
      %v289 = vrcp.pop %v283
      %v292 = vunpack.c.l.s4 1983009808
      %v293 = vunpack.c.0.s8 %v292
      %v294 = vlaneseq
      %v295 = vshrl.u32 %v294, 7
      %v296 = vsub.s32 %v293, %v295
      %v297 = vrot.slane %v232, %v296
      %v298 = vcombine.high %v297, %v297
      %v301 = vadd.f32 %v284, %v297
      %v302 = vadd.f32 %v285, %v298
      %v303 = vadd.f32 %v286, %v297
      %v304 = vadd.f32 %v287, %v298
      %v305 = vadd.f32 %v288, %v297
      %v306 = vadd.f32 %v289, %v298
      %v307 = vmul.f32 %v301, 8.0
      %v308 = vmul.f32 %v302, 8.0
      %v309 = vmul.f32 %v303, 8.0
      %v310 = vmul.f32 %v304, 8.0
      %v311 = vmul.f32 %v305, 8.0
      %v312 = vmul.f32 %v306, 8.0
      %313 = vst [vmem:[%s230] sm:$0x3] %v307
      %314 = vst [vmem:[%s230 + $0x8] sm:$0x3] %v308
      %315 = vst [vmem:[%s230 + $0x20] sm:$0x3] %v309
      %316 = vst [vmem:[%s230 + $0x28] sm:$0x3] %v310
      %317 = vst [vmem:[%s230 + $0x40] sm:$0x3] %v311
      %318 = vst [vmem:[%s230 + $0x48] sm:$0x3] %v312
      %v319 = vmul.f32 %v242, 1.442695
      %v320 = vpow.pop %v319
      %v321 = vmul.f32 %v243, 1.442695
      %v322 = vpow.pop %v321
      %v323 = vmul.f32 %v244, 1.442695
      %v324 = vpow.pop %v323
      %v325 = vmul.f32 %v245, 1.442695
      %v326 = vpow.pop %v325
      %v327 = vmul.f32 %v246, 1.442695
      %v328 = vpow.pop %v327
      %v329 = vmul.f32 %v247, 1.442695
      %v330 = vpow.pop %v329
      %332 = vset.pattern.permute.xlu0 0
      %333 = vperm.xlu0 %332, %v233
      %v334 = vpop.permute.xlu0 %333
      %336 = vset.pattern.permute.xlu0 0
      %337 = vperm.xlu0 %336, %v234
      %v338 = vpop.permute.xlu0 %337
      %340 = vset.pattern.permute.xlu0 0
      %341 = vperm.xlu0 %340, %v235
      %v342 = vpop.permute.xlu0 %341
      %v343 = vrot.slane %v334, 6
      %v344 = vrot.slane %v338, 6
      %v345 = vrot.slane %v342, 6
      %v349 = vmul.f32 %v320, %v343
      %v350 = vmul.f32 %v322, %v343
      %v351 = vmul.f32 %v324, %v344
      %v352 = vmul.f32 %v326, %v344
      %v353 = vmul.f32 %v328, %v345
      %v354 = vmul.f32 %v330, %v345
      %355 = vst [vmem:[%s230] sm:$0xc] %v349
      %356 = vst [vmem:[%s230 + $0x8] sm:$0xc] %v350
      %357 = vst [vmem:[%s230 + $0x20] sm:$0xc] %v351
      %358 = vst [vmem:[%s230 + $0x28] sm:$0xc] %v352
      %359 = vst [vmem:[%s230 + $0x40] sm:$0xc] %v353
      %360 = vst [vmem:[%s230 + $0x48] sm:$0xc] %v354
      %v361 = vsub.f32 0.0, %v248
      %v362 = vsub.f32 0.0, %v249
      %v363 = vsub.f32 0.0, %v250
      %v364 = vsub.f32 0.0, %v251
      %v365 = vsub.f32 0.0, %v252
      %v366 = vsub.f32 0.0, %v253
      %v367 = vsub.f32 0.0, %v254
      %v368 = vsub.f32 0.0, %v255
      %v369 = vsub.f32 0.0, %v256
      %v370 = vsub.f32 0.0, %v257
      %v371 = vsub.f32 0.0, %v258
      %v372 = vsub.f32 0.0, %v259
      %v373 = vmul.f32 %v361, 1.442695
      %v374 = vpow.pop %v373
      %v375 = vmul.f32 %v362, 1.442695
      %v376 = vpow.pop %v375
      %v377 = vmul.f32 %v363, 1.442695
      %v378 = vpow.pop %v377
      %v379 = vmul.f32 %v364, 1.442695
      %v380 = vpow.pop %v379
      %v381 = vmul.f32 %v365, 1.442695
      %v382 = vpow.pop %v381
      %v383 = vmul.f32 %v366, 1.442695
      %v384 = vpow.pop %v383
      %v385 = vmul.f32 %v367, 1.442695
      %v386 = vpow.pop %v385
      %v387 = vmul.f32 %v368, 1.442695
      %v388 = vpow.pop %v387
      %v389 = vmul.f32 %v369, 1.442695
      %v390 = vpow.pop %v389
      %v391 = vmul.f32 %v370, 1.442695
      %v392 = vpow.pop %v391
      %v393 = vmul.f32 %v371, 1.442695
      %v394 = vpow.pop %v393
      %v395 = vmul.f32 %v372, 1.442695
      %v396 = vpow.pop %v395
      %v397 = vadd.f32 %v374, 1.0
      %v398 = vadd.f32 %v376, 1.0
      %v399 = vadd.f32 %v378, 1.0
      %v400 = vadd.f32 %v380, 1.0
      %v401 = vadd.f32 %v382, 1.0
      %v402 = vadd.f32 %v384, 1.0
      %v403 = vadd.f32 %v386, 1.0
      %v404 = vadd.f32 %v388, 1.0
      %v405 = vadd.f32 %v390, 1.0
      %v406 = vadd.f32 %v392, 1.0
      %v407 = vadd.f32 %v394, 1.0
      %v408 = vadd.f32 %v396, 1.0
      %v409 = vrcp.pop %v397
      %v410 = vrcp.pop %v398
      %v411 = vrcp.pop %v399
      %v412 = vrcp.pop %v400
      %v413 = vrcp.pop %v401
      %v414 = vrcp.pop %v402
      %v415 = vrcp.pop %v403
      %v416 = vrcp.pop %v404
      %v417 = vrcp.pop %v405
      %v418 = vrcp.pop %v406
      %v419 = vrcp.pop %v407
      %v420 = vrcp.pop %v408
      %421 = vst [vmem:[%s230] sm:$0xf0] %v409
      %422 = vst [vmem:[%s230 + $0x8] sm:$0xf0] %v410
      %423 = vst [vmem:[%s230 + $0x10] sm:$0x1] %v411
      %424 = vst [vmem:[%s230 + $0x18] sm:$0x1] %v412
      %425 = vst [vmem:[%s230 + $0x20] sm:$0xf0] %v413
      %426 = vst [vmem:[%s230 + $0x28] sm:$0xf0] %v414
      %427 = vst [vmem:[%s230 + $0x30] sm:$0x1] %v415
      %428 = vst [vmem:[%s230 + $0x38] sm:$0x1] %v416
      %429 = vst [vmem:[%s230 + $0x40] sm:$0xf0] %v417
      %430 = vst [vmem:[%s230 + $0x48] sm:$0xf0] %v418
      %431 = vst [vmem:[%s230 + $0x50] sm:$0x1] %v419
      %432 = vst [vmem:[%s230 + $0x58] sm:$0x1] %v420
      %s433 = smul.u32 2, %s19
      %p434 = scmp.lt.s32.totalorder %s18, 1
      %s435 = scalar_select %p434, %s18, 1
      %p436 = scmp.lt.s32.totalorder %s433, 1
      %s437 = scalar_select %p436, %s433, 1
      %s438 = smul.addr %s435, 12
      %s439 = sadd.s32 %s437, %s438
      %s440 = smul.addr %s439, 8
      %s441 = scalar_lea.vmem %s3, %s440
      // Predicated region
      $region33: #{tpu_custom_call.1} parent=31 // pred_check
        %p442 = pneg %p121
      $region34: #{tpu_custom_call.1} parent=31 // pred_check_branch
        %444 = sbr.rel (%p442) target = $region36
      $region35: #{tpu_custom_call.1} parent=31 // pred_region
        %s445 = smul.u32 2, %s19
      $region36: #{tpu_custom_call.1} parent=31 // pred_fallthru
        _
    $region32: #{tpu_custom_call.1} parent=5 // pred_fallthru
      _
    %p446 = scmp.le.s32.totalorder 2, %s9
    // Predicated region
    $region37: #{tpu_custom_call.1} parent=5 // pred_check
      %p447 = pneg %p446
    $region38: #{tpu_custom_call.1} parent=5 // pred_check_branch
      %449 = sbr.rel (%p447) target = $region40
    $region39: #{tpu_custom_call.1} parent=5 // pred_region
      %s450 = ssub.s32 %s9, 2
      // Predicated region
      $region41: #{tpu_custom_call.1} parent=39 // pred_check
        %p451 = pneg %p127
      $region42: #{tpu_custom_call.1} parent=39 // pred_check_branch
        %453 = sbr.rel (%p451) target = $region44
      $region43: #{tpu_custom_call.1} parent=39 // pred_region
        %s454 = smul.u32 2, %s21
        %p455 = scmp.lt.s32.totalorder %s20, 1
        %s456 = scalar_select %p455, %s20, 1
        %p457 = scmp.lt.s32.totalorder %s454, 1
        %s458 = scalar_select %p457, %s454, 1
        %s459 = smul.addr %s456, 12
        %s460 = sadd.s32 %s458, %s459
        %s461 = smul.addr %s460, 8
        %s462 = scalar_lea.vmem %s3, %s461
      $region44: #{tpu_custom_call.1} parent=39 // pred_fallthru
        _
    $region40: #{tpu_custom_call.1} parent=5 // pred_fallthru
      _
  $region6: #{tpu_custom_call.1} parent=0 // loop_footer
    %s13 = sadd.s32 1, %s9
  $region7: #{tpu_custom_call.1} parent=0 // loop_footer_branch
    %8 = sbr.rel target = $region3
  $region8: #{tpu_custom_call.1} parent=0 // loop_exit
    _

</llo_original>
